<compile_context>
chip_gen: v7x
topology: tpu7x:2x2x1
jax: 0.10.0
libtpu: 0.0.40
codegen_flags: <defaults>
</compile_context>

<pallas_src>
import jax
import jax.numpy as jnp
from jax.experimental import pallas as pl
from jax.experimental.pallas import tpu as pltpu

LANE = 128


def _round_up(x, m):
    return ((x + m - 1) // m) * m


# ---------------------------------------------------------------------------
# Kernel: four MXU matmuls (bf16 operands, f32 accumulation) with a minimal
# f32 "+shift; relu" epilogue per hidden layer.  Each ref is read exactly once.
# Weight / shift refs are VMEM-resident across all grid steps (constant
# index_map); only the x tile and the (TB, C) logit tile move per step.
# ---------------------------------------------------------------------------
def metal_classifier_kernel(x_ref, w1_ref, w2_ref, w3_ref, w4_ref,
                            shifts_ref, b4_ref, out_ref):
    # In-kernel cast of the input tile (hidden under the tile DMA).
    h = x_ref[...].astype(jnp.bfloat16)

    # Layer 1: fc1 + bn1 (scale folded into w1) + relu
    h = jnp.dot(h, w1_ref[...], preferred_element_type=jnp.float32)
    h = jnp.maximum(h + shifts_ref[0:1, : w1_ref.shape[1]], 0.0)
    h = h.astype(jnp.bfloat16)

    # Layer 2: fc2 + bn2 + relu
    h = jnp.dot(h, w2_ref[...], preferred_element_type=jnp.float32)
    h = jnp.maximum(h + shifts_ref[1:2, : w2_ref.shape[1]], 0.0)
    h = h.astype(jnp.bfloat16)

    # Layer 3: fc3 + bn3 + relu
    h = jnp.dot(h, w3_ref[...], preferred_element_type=jnp.float32)
    h = jnp.maximum(h + shifts_ref[2:3, : w3_ref.shape[1]], 0.0)
    h = h.astype(jnp.bfloat16)

    # Layer 4: fc4 (logits), f32 output at the real class width.
    h = jnp.dot(h, w4_ref[...], preferred_element_type=jnp.float32)
    out_ref[...] = h + b4_ref[...]


# ---------------------------------------------------------------------------
# Parameter prep (plain JAX, runs once): fold BN into weights/shifts, zero-pad
# hidden lane dims to multiples of 128, cast weights to bf16.  Final layer's
# columns are kept at num_classes (no lane padding) so the HBM writeback stays
# at the real logit width.  Hidden shifts are stacked into one (3, W_max) slab.
# ---------------------------------------------------------------------------
def _prep_params(params, eps=1e-5):
    def fold(w, b, g, be, m, v):
        scale = g / jnp.sqrt(v + eps)              # per-output-feature scale
        shift = (b - m) * scale + be               # per-output-feature shift
        return w * scale[None, :], shift           # scale folded into columns

    folded = [
        fold(params["w1"], params["b1"], params["g1"], params["be1"],
             params["m1"], params["v1"]),
        fold(params["w2"], params["b2"], params["g2"], params["be2"],
             params["m2"], params["v2"]),
        fold(params["w3"], params["b3"], params["g3"], params["be3"],
             params["m3"], params["v3"]),
    ]

    ws, ts = [], []
    prev_pad = 0
    for w, t in folded:
        if prev_pad:                               # match previous layer's padded width
            w = jnp.pad(w, ((0, prev_pad), (0, 0)))
        n = w.shape[1]
        pad = _round_up(n, LANE) - n
        if pad:
            w = jnp.pad(w, ((0, 0), (0, pad)))
            t = jnp.pad(t, ((0, pad),))
        ws.append(w.astype(jnp.bfloat16))
        ts.append(t.astype(jnp.float32))
        prev_pad = pad

    # Final layer: rows padded to previous layer's padded width, columns kept
    # at num_classes (masked vst is far cheaper than a 128-wide f32 writeback).
    w4 = params["w4"]
    if prev_pad:
        w4 = jnp.pad(w4, ((0, prev_pad), (0, 0)))
    w4 = w4.astype(jnp.bfloat16)
    b4 = params["b4"].reshape(1, -1).astype(jnp.float32)

    # Stack the three hidden-layer shifts into one resident (3, W_max) slab.
    w_max = max(t.shape[0] for t in ts)
    shifts = jnp.stack([jnp.pad(t, (0, w_max - t.shape[0])) for t in ts], axis=0)

    return (ws[0], ws[1], ws[2], w4), shifts, b4


def _resident_spec(arr):
    # Full-array block, constant block index -> stays in VMEM across all steps.
    return pl.BlockSpec(arr.shape, lambda i: (0, 0))


# ---------------------------------------------------------------------------
# Wrapper: batch-tiled pallas_call (no wrapper-side pad/cast of x, no output
# slicing).
# ---------------------------------------------------------------------------
def metal_classifier_forward(x, params, *, batch_tile=2048, eps=1e-5):
    B, D_in = x.shape
    C = params["w4"].shape[1]

    (w1, w2, w3, w4), shifts, b4 = _prep_params(params, eps=eps)

    # Batch tile: multiple of 16, <= batch_tile, sized so the grid has >= 2
    # steps when B allows (v7x megacore), and never exceeding round_up(B, 8).
    TB = min(batch_tile, _round_up(pl.cdiv(B, 2), 16))
    TB = max(8, min(TB, _round_up(B, 8)))
    grid = (pl.cdiv(B, TB),)

    out = pl.pallas_call(
        metal_classifier_kernel,
        out_shape=jax.ShapeDtypeStruct((B, C), jnp.float32),
        grid=grid,
        in_specs=[
            pl.BlockSpec((TB, D_in), lambda i: (i, 0)),   # x tile (original dtype)
            _resident_spec(w1),
            _resident_spec(w2),
            _resident_spec(w3),
            _resident_spec(w4),
            _resident_spec(shifts),
            _resident_spec(b4),
        ],
        out_specs=pl.BlockSpec((TB, C), lambda i: (i, 0)),
        compiler_params=pltpu.CompilerParams(
            dimension_semantics=("parallel",)),
    )(x, w1, w2, w3, w4, shifts, b4)

    return out


# ---------------------------------------------------------------------------
# Deterministic synthetic parameters (shapes match the nn.Module).
# ---------------------------------------------------------------------------
def init_params(key, input_size, num_classes, hidden_size=128):
    h1, h2, h3 = hidden_size * 2, hidden_size, hidden_size // 2
    keys = jax.random.split(key, 8)

    def lin(kw, kb, d_in, d_out):
        w = jax.random.normal(kw, (d_in, d_out), jnp.float32) / jnp.sqrt(d_in)
        b = jax.random.normal(kb, (d_out,), jnp.float32) * 0.01
        return w, b

    w1, b1 = lin(keys[0], keys[1], input_size, h1)
    w2, b2 = lin(keys[2], keys[3], h1, h2)
    w3, b3 = lin(keys[4], keys[5], h2, h3)
    w4, b4 = lin(keys[6], keys[7], h3, num_classes)

    def bn(n):
        # PyTorch BatchNorm1d default init: weight=1, bias=0, mean=0, var=1
        return (jnp.ones((n,), jnp.float32), jnp.zeros((n,), jnp.float32),
                jnp.zeros((n,), jnp.float32), jnp.ones((n,), jnp.float32))

    g1, be1, m1, v1 = bn(h1)
    g2, be2, m2, v2 = bn(h2)
    g3, be3, m3, v3 = bn(h3)

    return dict(w1=w1, b1=b1, g1=g1, be1=be1, m1=m1, v1=v1,
                w2=w2, b2=b2, g2=g2, be2=be2, m2=m2, v2=v2,
                w3=w3, b3=b3, g3=g3, be3=be3, m3=m3, v3=v3,
                w4=w4, b4=b4)


# ---------------------------------------------------------------------------
# References for verification.
# ---------------------------------------------------------------------------
def reference_forward(x, params):
    """Pure-JAX f32 reference of the PyTorch eval-mode forward."""
    def bn_relu(h, b, g, be, m, v, eps=1e-5):
        h = h + b
        h = (h - m) / jnp.sqrt(v + eps) * g + be
        return jnp.maximum(h, 0.0)

    h = bn_relu(x @ params["w1"], params["b1"], params["g1"], params["be1"],
                params["m1"], params["v1"])
    h = bn_relu(h @ params["w2"], params["b2"], params["g2"], params["be2"],
                params["m2"], params["v2"])
    h = bn_relu(h @ params["w3"], params["b3"], params["g3"], params["be3"],
                params["m3"], params["v3"])
    return h @ params["w4"] + params["b4"]


def reference_forward_bf16(x, params, eps=1e-5):
    """Same folded bf16-matmul / f32-accumulate pipeline in plain JAX
    (checks the kernel's numerics tightly, independent of bf16 quantization)."""
    (w1, w2, w3, w4), shifts, b4 = _prep_params(params, eps=eps)
    t1 = shifts[0:1, : w1.shape[1]]
    t2 = shifts[1:2, : w2.shape[1]]
    t3 = shifts[2:3, : w3.shape[1]]
    h = x.astype(jnp.bfloat16)
    h = jnp.maximum(jnp.dot(h, w1, preferred_element_type=jnp.float32) + t1,
                    0.0).astype(jnp.bfloat16)
    h = jnp.maximum(jnp.dot(h, w2, preferred_element_type=jnp.float32) + t2,
                    0.0).astype(jnp.bfloat16)
    h = jnp.maximum(jnp.dot(h, w3, preferred_element_type=jnp.float32) + t3,
                    0.0).astype(jnp.bfloat16)
    return jnp.dot(h, w4, preferred_element_type=jnp.float32) + b4


if __name__ == "__main__":
    # Small shapes: batch=8, input_size=32, hidden_size=64 -> layers 128/64/32,
    # num_classes=8.
    B, INPUT_SIZE, NUM_CLASSES, HIDDEN = 8, 32, 8, 64

    key = jax.random.PRNGKey(0)
    kx, kp = jax.random.split(key)
    x = jax.random.normal(kx, (B, INPUT_SIZE), jnp.float32)
    params = init_params(kp, INPUT_SIZE, NUM_CLASSES, hidden_size=HIDDEN)

    out = metal_classifier_forward(x, params)
    out = jax.block_until_ready(out)
    assert out.shape == (B, NUM_CLASSES)

    # Tight check vs. an identical bf16/f32-accumulate pipeline (kernel numerics).
    ref_bf16 = reference_forward_bf16(x, params)
    assert jnp.allclose(out, ref_bf16, atol=2e-3, rtol=2e-3), \
        "mismatch vs bf16 reference"

    # Looser check vs. the exact f32 eval-mode module semantics
    # (difference is only bf16 operand quantization).
    ref_f32 = reference_forward(x, params)
    assert jnp.allclose(out, ref_f32, atol=1e-1, rtol=1e-1), \
        "mismatch vs f32 reference"

    print("KERNEL_OK")
</pallas_src>

<mosaic_0001>
module attributes {stable_mosaic.version = 11 : i64} {
  func.func @metal_classifier_kernel(%arg0: i32, %arg1: memref<8x32xf32, #tpu.memory_space<vmem>>, %arg2: memref<32x128xbf16, #tpu.memory_space<vmem>>, %arg3: memref<128x128xbf16, #tpu.memory_space<vmem>>, %arg4: memref<128x128xbf16, #tpu.memory_space<vmem>>, %arg5: memref<128x8xbf16, #tpu.memory_space<vmem>>, %arg6: memref<3x128xf32, #tpu.memory_space<vmem>>, %arg7: memref<1x8xf32, #tpu.memory_space<vmem>>, %arg8: memref<8x8xf32, #tpu.memory_space<vmem>>) attributes {dimension_semantics = [#tpu.dimension_semantics<parallel>], iteration_bounds = array<i64: 1>, scalar_prefetch = 0 : i64, scratch_operands = 0 : i64, tpu.core_type = #tpu.core_type<tc>, window_params = [{transform_indices = @transform_0, window_bounds = array<i64: 8, 32>}, {pipeline_mode = #tpu.pipeline_mode<synchronous>, transform_indices = @transform_1, window_bounds = array<i64: 32, 128>}, {pipeline_mode = #tpu.pipeline_mode<synchronous>, transform_indices = @transform_2, window_bounds = array<i64: 128, 128>}, {pipeline_mode = #tpu.pipeline_mode<synchronous>, transform_indices = @transform_3, window_bounds = array<i64: 128, 128>}, {pipeline_mode = #tpu.pipeline_mode<synchronous>, transform_indices = @transform_4, window_bounds = array<i64: 128, 8>}, {pipeline_mode = #tpu.pipeline_mode<synchronous>, transform_indices = @transform_5, window_bounds = array<i64: 3, 128>}, {pipeline_mode = #tpu.pipeline_mode<synchronous>, transform_indices = @transform_6, window_bounds = array<i64: 1, 8>}, {transform_indices = @transform_7, window_bounds = array<i64: 8, 8>}]} {
    %c0 = arith.constant 0 : index
    %c0_0 = arith.constant 0 : index
    %0 = vector.load %arg1[%c0, %c0_0] : memref<8x32xf32, #tpu.memory_space<vmem>>, vector<8x32xf32>
    %1 = arith.truncf %0 : vector<8x32xf32> to vector<8x32xbf16>
    %c0_1 = arith.constant 0 : index
    %c0_2 = arith.constant 0 : index
    %2 = vector.load %arg2[%c0_1, %c0_2] : memref<32x128xbf16, #tpu.memory_space<vmem>>, vector<32x128xbf16>
    %cst = arith.constant dense<0.000000e+00> : vector<8x128xf32>
    %3 = tpu.matmul %1, %2, %cst {dimension_numbers = #tpu.dot_dimension_numbers<[1], [0], [0], [1], [0, 0, 1, 1], [], []>} : vector<8x32xbf16>, vector<32x128xbf16>, vector<8x128xf32> -> vector<8x128xf32>
    %c0_3 = arith.constant 0 : index
    %c0_4 = arith.constant 0 : index
    %4 = vector.load %arg6[%c0_3, %c0_4] : memref<3x128xf32, #tpu.memory_space<vmem>>, vector<1x128xf32>
    %5 = vector.broadcast %4 : vector<1x128xf32> to vector<8x128xf32>
    %6 = arith.addf %3, %5 : vector<8x128xf32>
    %cst_5 = arith.constant 0.000000e+00 : f32
    %7 = vector.broadcast %cst_5 : f32 to vector<8x128xf32>
    %8 = arith.maximumf %6, %7 : vector<8x128xf32>
    %9 = arith.truncf %8 : vector<8x128xf32> to vector<8x128xbf16>
    %c0_6 = arith.constant 0 : index
    %c0_7 = arith.constant 0 : index
    %10 = vector.load %arg3[%c0_6, %c0_7] : memref<128x128xbf16, #tpu.memory_space<vmem>>, vector<128x128xbf16>
    %cst_8 = arith.constant dense<0.000000e+00> : vector<8x128xf32>
    %11 = tpu.matmul %9, %10, %cst_8 {dimension_numbers = #tpu.dot_dimension_numbers<[1], [0], [0], [1], [0, 0, 1, 1], [], []>} : vector<8x128xbf16>, vector<128x128xbf16>, vector<8x128xf32> -> vector<8x128xf32>
    %c1 = arith.constant 1 : index
    %c0_9 = arith.constant 0 : index
    %12 = vector.load %arg6[%c1, %c0_9] : memref<3x128xf32, #tpu.memory_space<vmem>>, vector<1x128xf32>
    %13 = vector.broadcast %12 : vector<1x128xf32> to vector<8x128xf32>
    %14 = arith.addf %11, %13 : vector<8x128xf32>
    %cst_10 = arith.constant 0.000000e+00 : f32
    %15 = vector.broadcast %cst_10 : f32 to vector<8x128xf32>
    %16 = arith.maximumf %14, %15 : vector<8x128xf32>
    %17 = arith.truncf %16 : vector<8x128xf32> to vector<8x128xbf16>
    %c0_11 = arith.constant 0 : index
    %c0_12 = arith.constant 0 : index
    %18 = vector.load %arg4[%c0_11, %c0_12] : memref<128x128xbf16, #tpu.memory_space<vmem>>, vector<128x128xbf16>
    %cst_13 = arith.constant dense<0.000000e+00> : vector<8x128xf32>
    %19 = tpu.matmul %17, %18, %cst_13 {dimension_numbers = #tpu.dot_dimension_numbers<[1], [0], [0], [1], [0, 0, 1, 1], [], []>} : vector<8x128xbf16>, vector<128x128xbf16>, vector<8x128xf32> -> vector<8x128xf32>
    %c2 = arith.constant 2 : index
    %c0_14 = arith.constant 0 : index
    %20 = vector.load %arg6[%c2, %c0_14] : memref<3x128xf32, #tpu.memory_space<vmem>>, vector<1x128xf32>
    %21 = vector.broadcast %20 : vector<1x128xf32> to vector<8x128xf32>
    %22 = arith.addf %19, %21 : vector<8x128xf32>
    %cst_15 = arith.constant 0.000000e+00 : f32
    %23 = vector.broadcast %cst_15 : f32 to vector<8x128xf32>
    %24 = arith.maximumf %22, %23 : vector<8x128xf32>
    %25 = arith.truncf %24 : vector<8x128xf32> to vector<8x128xbf16>
    %c0_16 = arith.constant 0 : index
    %c0_17 = arith.constant 0 : index
    %26 = vector.load %arg5[%c0_16, %c0_17] : memref<128x8xbf16, #tpu.memory_space<vmem>>, vector<128x8xbf16>
    %cst_18 = arith.constant dense<0.000000e+00> : vector<8x8xf32>
    %27 = tpu.matmul %25, %26, %cst_18 {dimension_numbers = #tpu.dot_dimension_numbers<[1], [0], [0], [1], [0, 0, 1, 1], [], []>} : vector<8x128xbf16>, vector<128x8xbf16>, vector<8x8xf32> -> vector<8x8xf32>
    %c0_19 = arith.constant 0 : index
    %c0_20 = arith.constant 0 : index
    %28 = vector.load %arg7[%c0_19, %c0_20] : memref<1x8xf32, #tpu.memory_space<vmem>>, vector<1x8xf32>
    %29 = vector.broadcast %28 : vector<1x8xf32> to vector<8x8xf32>
    %30 = arith.addf %27, %29 : vector<8x8xf32>
    %c0_21 = arith.constant 0 : index
    %c0_22 = arith.constant 0 : index
    %31 = vector.load %arg8[%c0_21, %c0_22] : memref<8x8xf32, #tpu.memory_space<vmem>>, vector<8x8xf32>
    tpu.vector_store %arg8[%c0_21, %c0_22], %30 {strides = array<i32>} : memref<8x8xf32, #tpu.memory_space<vmem>>, vector<8x8xf32>,
    return
  }
  func.func @transform_0(%arg0: i32) -> (i32, i32) {
    %c0_i32 = arith.constant 0 : i32
    %c0_i32_0 = arith.constant 0 : i32
    return %arg0, %c0_i32 : i32, i32
  }
  func.func @transform_1(%arg0: i32) -> (i32, i32) {
    %c0_i32 = arith.constant 0 : i32
    %c0_i32_0 = arith.constant 0 : i32
    %c0_i32_1 = arith.constant 0 : i32
    return %c0_i32, %c0_i32_0 : i32, i32
  }
  func.func @transform_2(%arg0: i32) -> (i32, i32) {
    %c0_i32 = arith.constant 0 : i32
    %c0_i32_0 = arith.constant 0 : i32
    %c0_i32_1 = arith.constant 0 : i32
    return %c0_i32, %c0_i32_0 : i32, i32
  }
  func.func @transform_3(%arg0: i32) -> (i32, i32) {
    %c0_i32 = arith.constant 0 : i32
    %c0_i32_0 = arith.constant 0 : i32
    %c0_i32_1 = arith.constant 0 : i32
    return %c0_i32, %c0_i32_0 : i32, i32
  }
  func.func @transform_4(%arg0: i32) -> (i32, i32) {
    %c0_i32 = arith.constant 0 : i32
    %c0_i32_0 = arith.constant 0 : i32
    %c0_i32_1 = arith.constant 0 : i32
    return %c0_i32, %c0_i32_0 : i32, i32
  }
  func.func @transform_5(%arg0: i32) -> (i32, i32) {
    %c0_i32 = arith.constant 0 : i32
    %c0_i32_0 = arith.constant 0 : i32
    %c0_i32_1 = arith.constant 0 : i32
    return %c0_i32, %c0_i32_0 : i32, i32
  }
  func.func @transform_6(%arg0: i32) -> (i32, i32) {
    %c0_i32 = arith.constant 0 : i32
    %c0_i32_0 = arith.constant 0 : i32
    %c0_i32_1 = arith.constant 0 : i32
    return %c0_i32, %c0_i32_0 : i32, i32
  }
  func.func @transform_7(%arg0: i32) -> (i32, i32) {
    %c0_i32 = arith.constant 0 : i32
    %c0_i32_0 = arith.constant 0 : i32
    return %arg0, %c0_i32 : i32, i32
  }
}

</mosaic_0001>

<llo_original>
// kernel: tpu_custom_call.1
$region0: #{tpu_custom_call.1}
  #allocation0 [shape = 'u32[]', space=smem, size = 0x4, offset = 0x4, fixed_abs, tag = 'smem constant byte address 0x4 - core index']
  #allocation1 [shape = 'u32[144,128]{1,0:T(1,128)}', space=vmem, size = 0x12000, scoped, tag = 'internal scratch']
  %s0 = inlined_call_operand.vmem [shape: f32[8,32], index: 0, kind: input, shape index: {}]
  %s1 = inlined_call_operand.hbm [shape: bf16[32,128], index: 1, kind: input, shape index: {}]
  %s2 = inlined_call_operand.vmem [shape: bf16[128,128], index: 2, kind: input, shape index: {}]
  %s3 = inlined_call_operand.hbm [shape: bf16[128,128], index: 3, kind: input, shape index: {}]
  %s4 = inlined_call_operand.vmem [shape: bf16[128,8], index: 4, kind: input, shape index: {}]
  %s5 = inlined_call_operand.vmem [shape: f32[3,128], index: 5, kind: input, shape index: {}]
  %s6 = inlined_call_operand.vmem [shape: f32[1,8], index: 6, kind: input, shape index: {}]
  %s7 = inlined_call_operand.hbm [shape: f32[8,8], index: 7, kind: output, shape index: {}]
  %s8 = sld [smem:[#allocation0]]
  $region46: #{tpu_custom_call.1} parent=0
    _
  %s10 = ssub.s32 1, %s8
  %s11 = scalar_select 0, %s10, %s8
  $region1: #{tpu_custom_call.1} parent=0
    #allocation2 [shape = 'u8[8192]{0}', space=vmem, size = 0x2000, scoped, tag = 'input window, operand 1, single buffered']
    #allocation3 [shape = 's32[1]{0}', space=sflag, size = 0x4, scoped, tag = 'scoped memory for tpu_custom_call.1']
    #allocation4 [shape = 's32[1]{0}', space=sflag, size = 0x4, scoped, tag = 'scoped memory for tpu_custom_call.1']
    #allocation5 [shape = 'u8[32768]{0}', space=vmem, size = 0x8000, scoped, tag = 'input window, operand 3, single buffered']
    #allocation6 [shape = 's32[1]{0}', space=sflag, size = 0x4, scoped, tag = 'scoped memory for tpu_custom_call.1']
    #allocation7 [shape = 'u8[4096]{0}', space=vmem, size = 0x1000, scoped, tag = 'output window, operand 0, single buffered']
    %12 = vsyncpa [#allocation3], 0
    %13 = vsyncpa [#allocation6], 0
    %14 = vsyncpa [#allocation4], 0
    // Predicated region
    $region2: #{tpu_custom_call.1} parent=1 // pred_check
      _
    $region3: #{tpu_custom_call.1} parent=1 // pred_check_branch
      %16 = sbr.rel (0) target = $region5
    $region4: #{tpu_custom_call.1} parent=1 // pred_region
      _
    $region5: #{tpu_custom_call.1} parent=1 // pred_fallthru
      _
    // Predicated region
    $region6: #{tpu_custom_call.1} parent=1 // pred_check
      _
    $region7: #{tpu_custom_call.1} parent=1 // pred_check_branch
      %18 = sbr.rel (0) target = $region9
    $region8: #{tpu_custom_call.1} parent=1 // pred_region
      %s20 = ssub.s32 256, 256
      %21 = vsyncadd [#allocation3], %s20
      %s22 = sshll.u32 [#allocation2], 4
      %s23 = int_to_ptr.vmem [resolvable:$true] %s22
      %28 = dma.hbm_to_vmem [thread:$0]  %s1, 256, %s23, [#allocation3], 64, 64, 4
    $region9: #{tpu_custom_call.1} parent=1 // pred_fallthru
      _
    // Predicated region
    $region10: #{tpu_custom_call.1} parent=1 // pred_check
      _
    $region11: #{tpu_custom_call.1} parent=1 // pred_check_branch
      %30 = sbr.rel (0) target = $region13
    $region12: #{tpu_custom_call.1} parent=1 // pred_region
      _
    $region13: #{tpu_custom_call.1} parent=1 // pred_fallthru
      _
    // Predicated region
    $region14: #{tpu_custom_call.1} parent=1 // pred_check
      _
    $region15: #{tpu_custom_call.1} parent=1 // pred_check_branch
      %32 = sbr.rel (0) target = $region17
    $region16: #{tpu_custom_call.1} parent=1 // pred_region
      %s34 = ssub.s32 1024, 1024
      %35 = vsyncadd [#allocation6], %s34
      %s36 = sshll.u32 [#allocation5], 4
      %s37 = int_to_ptr.vmem [resolvable:$true] %s36
      %42 = dma.hbm_to_vmem [thread:$0]  %s3, 1024, %s37, [#allocation6], 64, 64, 4
    $region17: #{tpu_custom_call.1} parent=1 // pred_fallthru
      _
    // Predicated region
    $region18: #{tpu_custom_call.1} parent=1 // pred_check
      _
    $region19: #{tpu_custom_call.1} parent=1 // pred_check_branch
      %44 = sbr.rel (0) target = $region21
    $region20: #{tpu_custom_call.1} parent=1 // pred_region
      _
    $region21: #{tpu_custom_call.1} parent=1 // pred_fallthru
      _
    // Predicated region
    $region22: #{tpu_custom_call.1} parent=1 // pred_check
      _
    $region23: #{tpu_custom_call.1} parent=1 // pred_check_branch
      %46 = sbr.rel (0) target = $region25
    $region24: #{tpu_custom_call.1} parent=1 // pred_region
      _
    $region25: #{tpu_custom_call.1} parent=1 // pred_fallthru
      _
    // Predicated region
    $region26: #{tpu_custom_call.1} parent=1 // pred_check
      _
    $region27: #{tpu_custom_call.1} parent=1 // pred_check_branch
      %48 = sbr.rel (0) target = $region29
    $region28: #{tpu_custom_call.1} parent=1 // pred_region
      _
    $region29: #{tpu_custom_call.1} parent=1 // pred_fallthru
      _
    // Predicated region
    $region30: #{tpu_custom_call.1} parent=1 // pred_check
      _
    $region31: #{tpu_custom_call.1} parent=1 // pred_check_branch
      %50 = sbr.rel (0) target = $region33
    $region32: #{tpu_custom_call.1} parent=1 // pred_region
      %51 = dma.done [#allocation3], 256
    $region33: #{tpu_custom_call.1} parent=1 // pred_fallthru
      _
    // Predicated region
    $region34: #{tpu_custom_call.1} parent=1 // pred_check
      _
    $region35: #{tpu_custom_call.1} parent=1 // pred_check_branch
      %53 = sbr.rel (0) target = $region37
    $region36: #{tpu_custom_call.1} parent=1 // pred_region
      %54 = dma.done [#allocation6], 1024
    $region37: #{tpu_custom_call.1} parent=1 // pred_fallthru
      _
    %v56 = vld [vmem:[%s0] sm:$0xff]
    %v57 = vpack.c.bf16 %v56, %v56
    %v58 = vld [vmem:[#allocation2] sm:$0xf]
    %v59 = vld [vmem:[#allocation2 + $0x4] sm:$0xf]
    %v60 = vld [vmem:[#allocation2 + $0x8] sm:$0xf]
    %v61 = vld [vmem:[#allocation2 + $0xc] sm:$0xf]
    %v62 = vld [vmem:[%s5] sm:$0x1]
    %v63 = vlaneseq
    %v64 = vshrl.u32 %v63, 7
    %v65 = vsub.s32 0, %v64
    %v66 = vrot.slane %v62, %v65
    %v71 = vunpack.c.l.b16 %v58
    %v72 = vunpack.c.l.b16 %v59
    %v73 = vunpack.c.l.b16 %v60
    %v74 = vunpack.c.l.b16 %v61
    %v75 = vpack.c.b16 %v72, %v71
    %v76 = vpack.c.b16 %v74, %v73
    %vm79 = vcmask 261120
    %v81 = vsel %vm79, %v57, 0
    %83 = vmatprep.subr.bf16.mxu0 0
    %84 = vmatpush1.bf16.msra.mxu0 %v75
    %85 = vmatprep.subr.bf16.mxu0 0
    %86 = vmatpush1.bf16.msra.mxu0 %v76
    %87 = vmatprep.subr.bf16.mxu0 0
    %88 = vmatpush1.bf16.msra.mxu0 0
    %89 = vmatprep.subr.bf16.mxu0 0
    %90 = vmatpush1.bf16.msra.mxu0 0
    %91 = vmatprep.subr.bf16.mxu0 0
    %92 = vmatpush1.bf16.msra.mxu0 0
    %93 = vmatprep.subr.bf16.mxu0 0
    %94 = vmatpush1.bf16.msra.mxu0 0
    %95 = vmatprep.subr.bf16.mxu0 0
    %96 = vmatpush1.bf16.msra.mxu0 0
    %97 = vmatprep.subr.bf16.mxu0 0
    %98 = vmatpush1.bf16.msra.mxu0 0
    %99 = vmatprep.subr.bf16.mxu0 0
    %100 = vmatpush1.bf16.msra.mxu0 0
    %101 = vmatprep.subr.bf16.mxu0 0
    %102 = vmatpush1.bf16.msra.mxu0 0
    %103 = vmatprep.subr.bf16.mxu0 0
    %104 = vmatpush1.bf16.msra.mxu0 0
    %105 = vmatprep.subr.bf16.mxu0 0
    %106 = vmatpush1.bf16.msra.mxu0 0
    %107 = vmatprep.subr.bf16.mxu0 0
    %108 = vmatpush1.bf16.msra.mxu0 0
    %109 = vmatprep.subr.bf16.mxu0 0
    %110 = vmatpush1.bf16.msra.mxu0 0
    %111 = vmatprep.subr.bf16.mxu0 0
    %112 = vmatpush1.bf16.msra.mxu0 0
    %113 = vmatprep.subr.bf16.mxu0 0
    %114 = vmatpush1.bf16.msra.mxu0 0
    %115 = vmatprep.mubr.bf16.mxu0 0
    %116 = vmatmul.mubr.bf16.gmra.mrb[0].mxu0 %v81
    %v117 = vpop.f32.mrb[0].mxu0
    %v118 = vadd.f32 %v66, %v117
    %v119 = vpop.f32.mrb[0].mxu0
    %v120 = vpop.f32.mrb[0].mxu0
    %v121 = vpop.f32.mrb[0].mxu0
    %122 = vdwg.mxu0
    %v123 = vmax.f32 %v118, 0.0
    %v124 = vpack.c.bf16 %v123, %v123
    %v125 = vld [vmem:[%s2] sm:$0xf]
    %v126 = vld [vmem:[%s2 + $0x4] sm:$0xf]
    %v127 = vld [vmem:[%s2 + $0x8] sm:$0xf]
    %v128 = vld [vmem:[%s2 + $0xc] sm:$0xf]
    %v129 = vld [vmem:[%s2 + $0x10] sm:$0xf]
    %v130 = vld [vmem:[%s2 + $0x14] sm:$0xf]
    %v131 = vld [vmem:[%s2 + $0x18] sm:$0xf]
    %v132 = vld [vmem:[%s2 + $0x1c] sm:$0xf]
    %v133 = vld [vmem:[%s2 + $0x20] sm:$0xf]
    %v134 = vld [vmem:[%s2 + $0x24] sm:$0xf]
    %v135 = vld [vmem:[%s2 + $0x28] sm:$0xf]
    %v136 = vld [vmem:[%s2 + $0x2c] sm:$0xf]
    %v137 = vld [vmem:[%s2 + $0x30] sm:$0xf]
    %v138 = vld [vmem:[%s2 + $0x34] sm:$0xf]
    %v139 = vld [vmem:[%s2 + $0x38] sm:$0xf]
    %v140 = vld [vmem:[%s2 + $0x3c] sm:$0xf]
    %v141 = vld [vmem:[%s5 + $0x1] sm:$0x1]
    %v142 = vlaneseq
    %v143 = vshrl.u32 %v142, 7
    %v144 = vsub.s32 0, %v143
    %v145 = vrot.slane %v141, %v144
    %v162 = vunpack.c.l.b16 %v125
    %v163 = vunpack.c.l.b16 %v126
    %v164 = vunpack.c.l.b16 %v127
    %v165 = vunpack.c.l.b16 %v128
    %v166 = vunpack.c.l.b16 %v129
    %v167 = vunpack.c.l.b16 %v130
    %v168 = vunpack.c.l.b16 %v131
    %v169 = vunpack.c.l.b16 %v132
    %v170 = vunpack.c.l.b16 %v133
    %v171 = vunpack.c.l.b16 %v134
    %v172 = vunpack.c.l.b16 %v135
    %v173 = vunpack.c.l.b16 %v136
    %v174 = vunpack.c.l.b16 %v137
    %v175 = vunpack.c.l.b16 %v138
    %v176 = vunpack.c.l.b16 %v139
    %v177 = vunpack.c.l.b16 %v140
    %v178 = vpack.c.b16 %v163, %v162
    %v179 = vpack.c.b16 %v165, %v164
    %v180 = vpack.c.b16 %v167, %v166
    %v181 = vpack.c.b16 %v169, %v168
    %v182 = vpack.c.b16 %v171, %v170
    %v183 = vpack.c.b16 %v173, %v172
    %v184 = vpack.c.b16 %v175, %v174
    %v185 = vpack.c.b16 %v177, %v176
    %194 = vmatprep.subr.bf16.mxu0 0
    %195 = vmatpush1.bf16.msra.mxu0 %v178
    %196 = vmatprep.subr.bf16.mxu0 0
    %197 = vmatpush1.bf16.msra.mxu0 %v179
    %198 = vmatprep.subr.bf16.mxu0 0
    %199 = vmatpush1.bf16.msra.mxu0 %v180
    %200 = vmatprep.subr.bf16.mxu0 0
    %201 = vmatpush1.bf16.msra.mxu0 %v181
    %202 = vmatprep.subr.bf16.mxu0 0
    %203 = vmatpush1.bf16.msra.mxu0 %v182
    %204 = vmatprep.subr.bf16.mxu0 0
    %205 = vmatpush1.bf16.msra.mxu0 %v183
    %206 = vmatprep.subr.bf16.mxu0 0
    %207 = vmatpush1.bf16.msra.mxu0 %v184
    %208 = vmatprep.subr.bf16.mxu0 0
    %209 = vmatpush1.bf16.msra.mxu0 %v185
    %210 = vmatprep.subr.bf16.mxu0 0
    %211 = vmatpush1.bf16.msra.mxu0 0
    %212 = vmatprep.subr.bf16.mxu0 0
    %213 = vmatpush1.bf16.msra.mxu0 0
    %214 = vmatprep.subr.bf16.mxu0 0
    %215 = vmatpush1.bf16.msra.mxu0 0
    %216 = vmatprep.subr.bf16.mxu0 0
    %217 = vmatpush1.bf16.msra.mxu0 0
    %218 = vmatprep.subr.bf16.mxu0 0
    %219 = vmatpush1.bf16.msra.mxu0 0
    %220 = vmatprep.subr.bf16.mxu0 0
    %221 = vmatpush1.bf16.msra.mxu0 0
    %222 = vmatprep.subr.bf16.mxu0 0
    %223 = vmatpush1.bf16.msra.mxu0 0
    %224 = vmatprep.subr.bf16.mxu0 0
    %225 = vmatpush1.bf16.msra.mxu0 0
    %226 = vmatprep.mubr.bf16.mxu0 0
    %227 = vmatmul.mubr.bf16.gmra.mrb[0].mxu0 %v124
    %v228 = vpop.f32.mrb[0].mxu0
    %v229 = vadd.f32 %v145, %v228
    %v230 = vpop.f32.mrb[0].mxu0
    %v231 = vpop.f32.mrb[0].mxu0
    %v232 = vpop.f32.mrb[0].mxu0
    %233 = vdwg.mxu0
    %v234 = vmax.f32 %v229, 0.0
    %v235 = vpack.c.bf16 %v234, %v234
    %v236 = vld [vmem:[#allocation5] sm:$0xf]
    %v237 = vld [vmem:[#allocation5 + $0x4] sm:$0xf]
    %v238 = vld [vmem:[#allocation5 + $0x8] sm:$0xf]
    %v239 = vld [vmem:[#allocation5 + $0xc] sm:$0xf]
    %v240 = vld [vmem:[#allocation5 + $0x10] sm:$0xf]
    %v241 = vld [vmem:[#allocation5 + $0x14] sm:$0xf]
    %v242 = vld [vmem:[#allocation5 + $0x18] sm:$0xf]
    %v243 = vld [vmem:[#allocation5 + $0x1c] sm:$0xf]
    %v244 = vld [vmem:[#allocation5 + $0x20] sm:$0xf]
    %v245 = vld [vmem:[#allocation5 + $0x24] sm:$0xf]
    %v246 = vld [vmem:[#allocation5 + $0x28] sm:$0xf]
    %v247 = vld [vmem:[#allocation5 + $0x2c] sm:$0xf]
    %v248 = vld [vmem:[#allocation5 + $0x30] sm:$0xf]
    %v249 = vld [vmem:[#allocation5 + $0x34] sm:$0xf]
    %v250 = vld [vmem:[#allocation5 + $0x38] sm:$0xf]
    %v251 = vld [vmem:[#allocation5 + $0x3c] sm:$0xf]
    %v252 = vld [vmem:[%s5 + $0x2] sm:$0x1]
    %v253 = vlaneseq
    %v254 = vshrl.u32 %v253, 7
    %v255 = vsub.s32 0, %v254
    %v256 = vrot.slane %v252, %v255
    %v273 = vunpack.c.l.b16 %v236
    %v274 = vunpack.c.l.b16 %v237
    %v275 = vunpack.c.l.b16 %v238
    %v276 = vunpack.c.l.b16 %v239
    %v277 = vunpack.c.l.b16 %v240
    %v278 = vunpack.c.l.b16 %v241
    %v279 = vunpack.c.l.b16 %v242
    %v280 = vunpack.c.l.b16 %v243
    %v281 = vunpack.c.l.b16 %v244
    %v282 = vunpack.c.l.b16 %v245
    %v283 = vunpack.c.l.b16 %v246
    %v284 = vunpack.c.l.b16 %v247
    %v285 = vunpack.c.l.b16 %v248
    %v286 = vunpack.c.l.b16 %v249
    %v287 = vunpack.c.l.b16 %v250
    %v288 = vunpack.c.l.b16 %v251
    %v289 = vpack.c.b16 %v274, %v273
    %v290 = vpack.c.b16 %v276, %v275
    %v291 = vpack.c.b16 %v278, %v277
    %v292 = vpack.c.b16 %v280, %v279
    %v293 = vpack.c.b16 %v282, %v281
    %v294 = vpack.c.b16 %v284, %v283
    %v295 = vpack.c.b16 %v286, %v285
    %v296 = vpack.c.b16 %v288, %v287
    %305 = vmatprep.subr.bf16.mxu0 0
    %306 = vmatpush1.bf16.msra.mxu0 %v289
    %307 = vmatprep.subr.bf16.mxu0 0
    %308 = vmatpush1.bf16.msra.mxu0 %v290
    %309 = vmatprep.subr.bf16.mxu0 0
    %310 = vmatpush1.bf16.msra.mxu0 %v291
    %311 = vmatprep.subr.bf16.mxu0 0
    %312 = vmatpush1.bf16.msra.mxu0 %v292
    %313 = vmatprep.subr.bf16.mxu0 0
    %314 = vmatpush1.bf16.msra.mxu0 %v293
    %315 = vmatprep.subr.bf16.mxu0 0
    %316 = vmatpush1.bf16.msra.mxu0 %v294
    %317 = vmatprep.subr.bf16.mxu0 0
    %318 = vmatpush1.bf16.msra.mxu0 %v295
    %319 = vmatprep.subr.bf16.mxu0 0
    %320 = vmatpush1.bf16.msra.mxu0 %v296
    %321 = vmatprep.subr.bf16.mxu0 0
    %322 = vmatpush1.bf16.msra.mxu0 0
    %323 = vmatprep.subr.bf16.mxu0 0
    %324 = vmatpush1.bf16.msra.mxu0 0
    %325 = vmatprep.subr.bf16.mxu0 0
    %326 = vmatpush1.bf16.msra.mxu0 0
    %327 = vmatprep.subr.bf16.mxu0 0
    %328 = vmatpush1.bf16.msra.mxu0 0
    %329 = vmatprep.subr.bf16.mxu0 0
    %330 = vmatpush1.bf16.msra.mxu0 0
    %331 = vmatprep.subr.bf16.mxu0 0
    %332 = vmatpush1.bf16.msra.mxu0 0
    %333 = vmatprep.subr.bf16.mxu0 0
    %334 = vmatpush1.bf16.msra.mxu0 0
    %335 = vmatprep.subr.bf16.mxu0 0
    %336 = vmatpush1.bf16.msra.mxu0 0
    %337 = vmatprep.mubr.bf16.mxu0 0
    %338 = vmatmul.mubr.bf16.gmra.mrb[0].mxu0 %v235
    %v339 = vpop.f32.mrb[0].mxu0
    %v340 = vadd.f32 %v256, %v339
    %v341 = vpop.f32.mrb[0].mxu0
    %v342 = vpop.f32.mrb[0].mxu0
    %v343 = vpop.f32.mrb[0].mxu0
    %344 = vdwg.mxu0
    %v345 = vmax.f32 %v340, 0.0
    %v346 = vpack.c.bf16 %v345, %v345
    %v347 = vld [vmem:[%s4] sm:$0xf]
    %v348 = vld [vmem:[%s4 + $0x4] sm:$0xf]
    %v349 = vld [vmem:[%s4 + $0x8] sm:$0xf]
    %v350 = vld [vmem:[%s4 + $0xc] sm:$0xf]
    %v351 = vld [vmem:[%s4 + $0x10] sm:$0xf]
    %v352 = vld [vmem:[%s4 + $0x14] sm:$0xf]
    %v353 = vld [vmem:[%s4 + $0x18] sm:$0xf]
    %v354 = vld [vmem:[%s4 + $0x1c] sm:$0xf]
    %v355 = vld [vmem:[%s4 + $0x20] sm:$0xf]
    %v356 = vld [vmem:[%s4 + $0x24] sm:$0xf]
    %v357 = vld [vmem:[%s4 + $0x28] sm:$0xf]
    %v358 = vld [vmem:[%s4 + $0x2c] sm:$0xf]
    %v359 = vld [vmem:[%s4 + $0x30] sm:$0xf]
    %v360 = vld [vmem:[%s4 + $0x34] sm:$0xf]
    %v361 = vld [vmem:[%s4 + $0x38] sm:$0xf]
    %v362 = vld [vmem:[%s4 + $0x3c] sm:$0xf]
    %v363 = vld [vmem:[%s6] sm:$0x1]
    %v365 = vlaneseq
    %v366 = vshrl.u32 %v365, 7
    %v367 = vsub.s32 0, %v366
    %v368 = vrot.slane %v363, %v367
    %v386 = vunpack.c.l.b16 %v347
    %v387 = vunpack.c.l.b16 %v348
    %v388 = vunpack.c.l.b16 %v349
    %v389 = vunpack.c.l.b16 %v350
    %v390 = vunpack.c.l.b16 %v351
    %v391 = vunpack.c.l.b16 %v352
    %v392 = vunpack.c.l.b16 %v353
    %v393 = vunpack.c.l.b16 %v354
    %v394 = vunpack.c.l.b16 %v355
    %v395 = vunpack.c.l.b16 %v356
    %v396 = vunpack.c.l.b16 %v357
    %v397 = vunpack.c.l.b16 %v358
    %v398 = vunpack.c.l.b16 %v359
    %v399 = vunpack.c.l.b16 %v360
    %v400 = vunpack.c.l.b16 %v361
    %v401 = vunpack.c.l.b16 %v362
    %v402 = vpack.c.b16 %v387, %v386
    %v403 = vpack.c.b16 %v389, %v388
    %v404 = vpack.c.b16 %v391, %v390
    %v405 = vpack.c.b16 %v393, %v392
    %v406 = vpack.c.b16 %v395, %v394
    %v407 = vpack.c.b16 %v397, %v396
    %v408 = vpack.c.b16 %v399, %v398
    %v409 = vpack.c.b16 %v401, %v400
    %418 = vmatprep.subr.bf16.mxu0 0
    %419 = vmatpush1.bf16.msra.mxu0 %v402
    %420 = vmatprep.subr.bf16.mxu0 0
    %421 = vmatpush1.bf16.msra.mxu0 %v403
    %422 = vmatprep.subr.bf16.mxu0 0
    %423 = vmatpush1.bf16.msra.mxu0 %v404
    %424 = vmatprep.subr.bf16.mxu0 0
    %425 = vmatpush1.bf16.msra.mxu0 %v405
    %426 = vmatprep.subr.bf16.mxu0 0
    %427 = vmatpush1.bf16.msra.mxu0 %v406
    %428 = vmatprep.subr.bf16.mxu0 0
    %429 = vmatpush1.bf16.msra.mxu0 %v407
    %430 = vmatprep.subr.bf16.mxu0 0
    %431 = vmatpush1.bf16.msra.mxu0 %v408
    %432 = vmatprep.subr.bf16.mxu0 0
    %433 = vmatpush1.bf16.msra.mxu0 %v409
    %434 = vmatprep.subr.bf16.mxu0 0
    %435 = vmatpush1.bf16.msra.mxu0 0
    %436 = vmatprep.subr.bf16.mxu0 0
    %437 = vmatpush1.bf16.msra.mxu0 0
    %438 = vmatprep.subr.bf16.mxu0 0
    %439 = vmatpush1.bf16.msra.mxu0 0
    %440 = vmatprep.subr.bf16.mxu0 0
    %441 = vmatpush1.bf16.msra.mxu0 0
    %442 = vmatprep.subr.bf16.mxu0 0
    %443 = vmatpush1.bf16.msra.mxu0 0
    %444 = vmatprep.subr.bf16.mxu0 0
    %445 = vmatpush1.bf16.msra.mxu0 0
    %446 = vmatprep.subr.bf16.mxu0 0
    %447 = vmatpush1.bf16.msra.mxu0 0
    %448 = vmatprep.subr.bf16.mxu0 0
    %449 = vmatpush1.bf16.msra.mxu0 0
    %450 = vmatprep.mubr.bf16.mxu0 0
    %451 = vmatmul.mubr.bf16.gmra.mrb[0].mxu0 %v346
    %v452 = vpop.f32.mrb[0].mxu0
    %v453 = vadd.f32 %v368, %v452
    %v454 = vpop.f32.mrb[0].mxu0
    %v455 = vpop.f32.mrb[0].mxu0
    %v456 = vpop.f32.mrb[0].mxu0
    %457 = vdwg.mxu0
    %vm458 = vcmask 64512
    %459 = vst.msk [vmem:[#allocation7] sm:$0xff] %vm458, %v453
    // Predicated region
    $region38: #{tpu_custom_call.1} parent=1 // pred_check
      _
    $region39: #{tpu_custom_call.1} parent=1 // pred_check_branch
      %461 = sbr.rel (0) target = $region41
    $region40: #{tpu_custom_call.1} parent=1 // pred_region
      %s463 = ssub.s32 128, 128
      %464 = vsyncadd [#allocation4], %s463
      %s466 = sshll.u32 [#allocation7], 4
      %s467 = int_to_ptr.vmem [resolvable:$true] %s466
      %469 = dma.vmem_to_hbm [thread:$0]  %s467, 128, %s7, [#allocation4]
    $region41: #{tpu_custom_call.1} parent=1 // pred_fallthru
      _
    // Predicated region
    $region42: #{tpu_custom_call.1} parent=1 // pred_check
      _
    $region43: #{tpu_custom_call.1} parent=1 // pred_check_branch
      %471 = sbr.rel (0) target = $region45
    $region44: #{tpu_custom_call.1} parent=1 // pred_region
      %472 = dma.done [#allocation4], 128
    $region45: #{tpu_custom_call.1} parent=1 // pred_fallthru
      _
    %473 = vsyncpa [#allocation3], 1
    %474 = vsyncpa [#allocation6], 1
    %475 = vsyncpa [#allocation4], 1

</llo_original>
